<compile_context>
chip_gen: v5e
topology: v5e:2x2
jax: 0.10.0
libtpu: 0.0.40
codegen_flags: <defaults>
</compile_context>

<pallas_src>
import functools

import jax
import jax.numpy as jnp
from jax.experimental import pallas as pl
from jax.experimental.pallas import tpu as pltpu


# ----------------------------- config (small test sizes) -----------------------------
HIDDEN_SIZE = 32            # config.hidden_size (small for test)
ROUTER_HIDDEN_SIZE = 128    # config.router_hidden_size
MAX_RECURSION_DEPTH = 4     # config.max_recursion_depth
MIN_RECURSION_DEPTH = 1     # config.min_recursion_depth
BATCH = 2
SEQ = 8

DEFAULT_TILE_TOKENS = 16384  # tokens per grid step at production sizes
_MIN_SPLIT_ROWS = 512        # packed rows: split one huge tile in two for megacore


def _round_up(x, n):
    return ((x + n - 1) // n) * n


# ----------------------------- Pallas kernel -----------------------------
def _router_kernel(xp_ref, w1p_ref, b1p_ref, w2p_ref, b2p_ref,
                   logits_ref, depth_ref, *, pack: int, num_depths: int, min_depth: int):
    """One tile of packed token rows (each row = `pack` tokens).

    xp_ref:     [TMP, pack*H]      input dtype (streamed; cast to bf16 in-kernel)
    w1p_ref:    [pack*H, pack*R]   bf16  block-diagonal, resident
    b1p_ref:    [1, pack*R]        f32   resident
    w2p_ref:    [pack*R, D*pack]   bf16  block-diagonal (depth-major cols), resident
    b2p_ref:    [1, D*pack]        f32   resident
    logits_ref: [1, D*pack, TMP]   f32   lane-dense transposed router logits
    depth_ref:  [1, pack, TMP]     int32 lane-dense recursion depths
    """
    # In-kernel cast hides under the DMA/MXU pipeline (no separate wrapper HBM pass).
    xp = xp_ref[...].astype(jnp.bfloat16)

    # Layer 1: contraction K = pack*H = 128 (MXU-friendly), f32 accumulate; bias + ReLU
    # (Dropout = identity in eval).
    hmid = jnp.dot(xp, w1p_ref[...], preferred_element_type=jnp.float32)
    hmid = jnp.maximum(hmid + b1p_ref[...], 0.0)
    # bf16 after the nonlinearity: halves the largest VMEM intermediate and feeds the
    # second GEMM at native bf16 MXU rate (accumulation stays f32).
    hmid = hmid.astype(jnp.bfloat16)

    # Layer 2 -> packed logits [TMP, D*pack]; column = depth*pack + token_offset.
    lg = jnp.dot(hmid, w2p_ref[...], preferred_element_type=jnp.float32) + b2p_ref[...]

    # Transpose so tokens sit on the lane axis: both outputs become unmasked,
    # lane-dense stores instead of 128-lane-padded partial stores.
    lgt = lg.T                                        # [D*pack, TMP]
    logits_ref[...] = lgt.reshape(logits_ref.shape)

    # Grouped argmax over depth (row blocks [d*pack:(d+1)*pack]), first-occurrence
    # tie-break to match torch.argmax.  Strict '>' also keeps NaN rows in-range
    # (depth falls back to min_depth) instead of producing an out-of-range index.
    best_val = lgt[0:pack, :]                         # depth 0 logits, all offsets
    best_idx = jnp.zeros(best_val.shape, jnp.int32)
    for dd in range(1, num_depths):
        v = lgt[dd * pack:(dd + 1) * pack, :]
        take = v > best_val
        best_idx = jnp.where(take, jnp.int32(dd), best_idx)
        best_val = jnp.where(take, v, best_val)
    depth_ref[...] = (best_idx + jnp.int32(min_depth)).reshape(depth_ref.shape)


def recursive_router_forward(hidden_states, w1, b1, w2, b2,
                             *, min_depth=MIN_RECURSION_DEPTH,
                             tile_tokens=DEFAULT_TILE_TOKENS):
    """JAX wrapper around the Pallas kernel.

    hidden_states: [B, S, H] float32 (or bf16)
    w1: [H, R], b1: [R], w2: [R, D], b2: [D]
    Returns:
      recursion_depths: [B, S] int32
      router_logits:    [B, S, D] float32
    """
    b, s, h = hidden_states.shape
    r = w1.shape[1]
    d = w2.shape[1]
    m = b * s

    # Token packing factor: pack tokens so the packed row is 128 lanes wide
    # (lane-dense x tiles + K=128 contraction). Falls back to 1 for H >= 128.
    pack = 128 // h if (h < 128 and 128 % h == 0) else 1

    # x stays in its native dtype (bf16 cast happens inside the kernel); the packed
    # reshape is a contiguous row-major reinterpret (free bitcast), not an HBM pass.
    x = hidden_states.reshape(m, h)
    m_pack = _round_up(m, pack)
    if m_pack != m:
        # TODO(synk): rare path (B*S not a multiple of `pack`) costs one XLA pad pass
        # over x; production shapes keep B*S % pack == 0.
        x = jnp.pad(x, ((0, m_pack - m), (0, 0)))
    mp = m_pack // pack
    xp = x.reshape(mp, pack * h)

    # Block-diagonal packed weights (built once in the wrapper; tiny).
    eye_p = jnp.eye(pack, dtype=jnp.float32)
    w1p = jnp.einsum("hr,pq->phqr", w1.astype(jnp.float32), eye_p)
    w1p = w1p.reshape(pack * h, pack * r).astype(jnp.bfloat16)
    b1p = jnp.tile(b1.astype(jnp.float32), pack).reshape(1, pack * r)
    # Depth-major output columns (col = depth*pack + offset) so the in-kernel grouped
    # argmax and the transposed logits store use contiguous sublane slices.
    w2p = jnp.einsum("rd,pq->prdq", w2.astype(jnp.float32), eye_p)
    w2p = w2p.reshape(pack * r, d * pack).astype(jnp.bfloat16)
    b2p = jnp.repeat(b2.astype(jnp.float32), pack).reshape(1, d * pack)

    # Row-tile selection (in packed rows). Large tiles amortize per-step overhead;
    # the cap keeps double-buffered x + the f32 hidden intermediate well inside v7x's
    # 64 MiB VMEM; a single oversized tile is split in two so ("parallel",) megacore
    # sharding has work for both TensorCores.
    tmp_cap = max(8, (tile_tokens // pack) // 8 * 8)
    if mp <= tmp_cap:
        if mp >= 2 * _MIN_SPLIT_ROWS:
            tmp_rows = _round_up(pl.cdiv(mp, 2), 8)
        else:
            tmp_rows = mp                     # single tile, full-extent block
    else:
        tmp_rows = tmp_cap
    num_tiles = pl.cdiv(mp, tmp_rows)         # ragged last tile handled by Pallas

    kernel = functools.partial(_router_kernel, pack=pack, num_depths=d,
                               min_depth=min_depth)

    rows_total = num_tiles * tmp_rows
    flops = 2 * rows_total * ((pack * h) * (pack * r) + (pack * r) * (d * pack))
    bytes_accessed = (rows_total * pack * h * x.dtype.itemsize      # x stream
                      + w1p.size * 2 + b1p.size * 4                 # resident weights
                      + w2p.size * 2 + b2p.size * 4
                      + rows_total * d * pack * 4                   # logits out
                      + rows_total * pack * 4)                      # depth out

    logits_t, depth_t = pl.pallas_call(
        kernel,
        grid=(num_tiles,),
        out_shape=(
            jax.ShapeDtypeStruct((num_tiles, d * pack, tmp_rows), jnp.float32),
            jax.ShapeDtypeStruct((num_tiles, pack, tmp_rows), jnp.int32),
        ),
        in_specs=[
            pl.BlockSpec((tmp_rows, pack * h), lambda i: (i, 0)),   # x: streamed
            pl.BlockSpec((pack * h, pack * r), lambda i: (0, 0)),   # w1p: resident
            pl.BlockSpec((1, pack * r), lambda i: (0, 0)),          # b1p: resident
            pl.BlockSpec((pack * r, d * pack), lambda i: (0, 0)),   # w2p: resident
            pl.BlockSpec((1, d * pack), lambda i: (0, 0)),          # b2p: resident
        ],
        out_specs=(
            pl.BlockSpec((1, d * pack, tmp_rows), lambda i: (i, 0, 0)),
            pl.BlockSpec((1, pack, tmp_rows), lambda i: (i, 0, 0)),
        ),
        compiler_params=pltpu.CompilerParams(
            dimension_semantics=("parallel",),          # shard M tiles across TCs (v7x)
            vmem_limit_bytes=48 * 1024 * 1024,          # headroom under v7x's 64 MiB
        ),
        cost_estimate=pl.CostEstimate(
            flops=flops, transcendentals=0, bytes_accessed=bytes_accessed),
    )(xp, w1p, b1p, w2p, b2p)

    # Un-interleave the lane-dense outputs back to module layout.  These are tiny XLA
    # transposes (~40 B/token) versus the ~230 B/token of padded writeback they avoid.
    total = num_tiles * tmp_rows * pack
    lt = logits_t.reshape(num_tiles, d, pack, tmp_rows)
    lt = jnp.transpose(lt, (0, 3, 2, 1)).reshape(total, d)
    router_logits = lt[:m].reshape(b, s, d)
    dt = jnp.transpose(depth_t, (0, 2, 1)).reshape(total)
    recursion_depths = dt[:m].reshape(b, s)
    return recursion_depths, router_logits


# ----------------------------- reference (pure JAX, f32) -----------------------------
def recursive_router_reference(hidden_states, w1, b1, w2, b2,
                               *, min_depth=MIN_RECURSION_DEPTH):
    h = jnp.maximum(hidden_states @ w1 + b1, 0.0)
    logits = h @ w2 + b2
    depths = jnp.argmax(logits, axis=-1).astype(jnp.int32) + min_depth
    return depths, logits


# ----------------------------- main -----------------------------
if __name__ == "__main__":
    key = jax.random.PRNGKey(0)
    k_x, k_w1, k_b1, k_w2, k_b2 = jax.random.split(key, 5)

    init_range = 0.02
    w1 = init_range * jax.random.normal(k_w1, (HIDDEN_SIZE, ROUTER_HIDDEN_SIZE), jnp.float32)
    b1 = init_range * jax.random.normal(k_b1, (ROUTER_HIDDEN_SIZE,), jnp.float32)
    w2 = init_range * jax.random.normal(k_w2, (ROUTER_HIDDEN_SIZE, MAX_RECURSION_DEPTH), jnp.float32)
    b2 = init_range * jax.random.normal(k_b2, (MAX_RECURSION_DEPTH,), jnp.float32)
    # `temperature` parameter only affects the stochastic training path; unused in eval.

    hidden_states = jax.random.normal(k_x, (BATCH, SEQ, HIDDEN_SIZE), jnp.float32)

    depths, logits = recursive_router_forward(hidden_states, w1, b1, w2, b2)
    depths = jax.block_until_ready(depths)
    logits = jax.block_until_ready(logits)

    assert depths.shape == (BATCH, SEQ)
    assert logits.shape == (BATCH, SEQ, MAX_RECURSION_DEPTH)

    ref_depths, ref_logits = recursive_router_reference(hidden_states, w1, b1, w2, b2)

    # bf16 activation/weight stream inside the kernel -> loosened tolerance vs f32 ref.
    assert jnp.allclose(logits, ref_logits, atol=5e-3, rtol=5e-2), (
        float(jnp.max(jnp.abs(logits - ref_logits))))

    # Internal consistency: in-kernel argmax must match argmax of the kernel's own logits.
    self_depths = jnp.argmax(logits, axis=-1).astype(jnp.int32) + MIN_RECURSION_DEPTH
    assert jnp.array_equal(depths, self_depths)

    # vs f32 reference: only require equal depths where the top-2 logit gap exceeds
    # the bf16 rounding noise (ties/near-ties may legitimately flip).
    sorted_ref = jnp.sort(ref_logits, axis=-1)
    gap = sorted_ref[..., -1] - sorted_ref[..., -2]
    stable = gap > 1e-2
    assert jnp.array_equal(jnp.where(stable, depths, 0),
                           jnp.where(stable, ref_depths, 0))

    print("KERNEL_OK")
</pallas_src>

<mosaic_0001>
module attributes {stable_mosaic.version = 11 : i64} {
  func.func @_router_kernel(%arg0: i32, %arg1: memref<4x128xf32, #tpu.memory_space<vmem>>, %arg2: memref<128x512xbf16, #tpu.memory_space<vmem>>, %arg3: memref<1x512xf32, #tpu.memory_space<vmem>>, %arg4: memref<512x16xbf16, #tpu.memory_space<vmem>>, %arg5: memref<1x16xf32, #tpu.memory_space<vmem>>, %arg6: memref<1x16x4xf32, #tpu.memory_space<vmem>>, %arg7: memref<1x4x4xi32, #tpu.memory_space<vmem>>) attributes {dimension_semantics = [#tpu.dimension_semantics<parallel>], iteration_bounds = array<i64: 1>, scalar_prefetch = 0 : i64, scratch_operands = 0 : i64, tpu.core_type = #tpu.core_type<tc>, window_params = [{transform_indices = @transform_0, window_bounds = array<i64: 4, 128>}, {pipeline_mode = #tpu.pipeline_mode<synchronous>, transform_indices = @transform_1, window_bounds = array<i64: 128, 512>}, {pipeline_mode = #tpu.pipeline_mode<synchronous>, transform_indices = @transform_2, window_bounds = array<i64: 1, 512>}, {pipeline_mode = #tpu.pipeline_mode<synchronous>, transform_indices = @transform_3, window_bounds = array<i64: 512, 16>}, {pipeline_mode = #tpu.pipeline_mode<synchronous>, transform_indices = @transform_4, window_bounds = array<i64: 1, 16>}, {transform_indices = @transform_5, window_bounds = array<i64: 1, 16, 4>}, {transform_indices = @transform_6, window_bounds = array<i64: 1, 4, 4>}]} {
    %c0 = arith.constant 0 : index
    %c0_0 = arith.constant 0 : index
    %0 = vector.load %arg1[%c0, %c0_0] : memref<4x128xf32, #tpu.memory_space<vmem>>, vector<4x128xf32>
    %1 = arith.truncf %0 : vector<4x128xf32> to vector<4x128xbf16>
    %c0_1 = arith.constant 0 : index
    %c0_2 = arith.constant 0 : index
    %2 = vector.load %arg2[%c0_1, %c0_2] : memref<128x512xbf16, #tpu.memory_space<vmem>>, vector<128x512xbf16>
    %cst = arith.constant dense<0.000000e+00> : vector<4x512xf32>
    %3 = tpu.matmul %1, %2, %cst {dimension_numbers = #tpu.dot_dimension_numbers<[1], [0], [0], [1], [0, 0, 1, 1], [], []>} : vector<4x128xbf16>, vector<128x512xbf16>, vector<4x512xf32> -> vector<4x512xf32>
    %c0_3 = arith.constant 0 : index
    %c0_4 = arith.constant 0 : index
    %4 = vector.load %arg3[%c0_3, %c0_4] : memref<1x512xf32, #tpu.memory_space<vmem>>, vector<1x512xf32>
    %5 = vector.broadcast %4 : vector<1x512xf32> to vector<4x512xf32>
    %6 = arith.addf %3, %5 : vector<4x512xf32>
    %cst_5 = arith.constant 0.000000e+00 : f32
    %7 = vector.broadcast %cst_5 : f32 to vector<4x512xf32>
    %8 = arith.maximumf %6, %7 : vector<4x512xf32>
    %9 = arith.truncf %8 : vector<4x512xf32> to vector<4x512xbf16>
    %c0_6 = arith.constant 0 : index
    %c0_7 = arith.constant 0 : index
    %10 = vector.load %arg4[%c0_6, %c0_7] : memref<512x16xbf16, #tpu.memory_space<vmem>>, vector<512x16xbf16>
    %cst_8 = arith.constant dense<0.000000e+00> : vector<4x16xf32>
    %11 = tpu.matmul %9, %10, %cst_8 {dimension_numbers = #tpu.dot_dimension_numbers<[1], [0], [0], [1], [0, 0, 1, 1], [], []>} : vector<4x512xbf16>, vector<512x16xbf16>, vector<4x16xf32> -> vector<4x16xf32>
    %c0_9 = arith.constant 0 : index
    %c0_10 = arith.constant 0 : index
    %12 = vector.load %arg5[%c0_9, %c0_10] : memref<1x16xf32, #tpu.memory_space<vmem>>, vector<1x16xf32>
    %13 = vector.broadcast %12 : vector<1x16xf32> to vector<4x16xf32>
    %14 = arith.addf %11, %13 : vector<4x16xf32>
    %15 = tpu.transpose %14, [1, 0] : vector<4x16xf32> -> vector<16x4xf32>
    %16 = vector.shape_cast %15 : vector<16x4xf32> to vector<1x16x4xf32>
    %c0_11 = arith.constant 0 : index
    %c0_12 = arith.constant 0 : index
    %c0_13 = arith.constant 0 : index
    %17 = vector.load %arg6[%c0_11, %c0_12, %c0_13] : memref<1x16x4xf32, #tpu.memory_space<vmem>>, vector<1x16x4xf32>
    tpu.vector_store %arg6[%c0_11, %c0_12, %c0_13], %16 {strides = array<i32>} : memref<1x16x4xf32, #tpu.memory_space<vmem>>, vector<1x16x4xf32>,
    %18 = vector.extract_strided_slice %15 {offsets = [0, 0], sizes = [4, 4], strides = [1, 1]} : vector<16x4xf32> to vector<4x4xf32>
    %c0_i32 = arith.constant 0 : i32
    %19 = vector.broadcast %c0_i32 : i32 to vector<4x4xi32>
    %20 = vector.extract_strided_slice %15 {offsets = [4, 0], sizes = [4, 4], strides = [1, 1]} : vector<16x4xf32> to vector<4x4xf32>
    %21 = arith.cmpf ogt, %20, %18 : vector<4x4xf32>
    %c1_i32 = arith.constant 1 : i32
    %22 = vector.broadcast %c1_i32 : i32 to vector<4x4xi32>
    %23 = arith.select %21, %22, %19 : vector<4x4xi1>, vector<4x4xi32>
    %24 = arith.select %21, %20, %18 : vector<4x4xi1>, vector<4x4xf32>
    %25 = vector.extract_strided_slice %15 {offsets = [8, 0], sizes = [4, 4], strides = [1, 1]} : vector<16x4xf32> to vector<4x4xf32>
    %26 = arith.cmpf ogt, %25, %24 : vector<4x4xf32>
    %c2_i32 = arith.constant 2 : i32
    %27 = vector.broadcast %c2_i32 : i32 to vector<4x4xi32>
    %28 = arith.select %26, %27, %23 : vector<4x4xi1>, vector<4x4xi32>
    %29 = arith.select %26, %25, %24 : vector<4x4xi1>, vector<4x4xf32>
    %30 = vector.extract_strided_slice %15 {offsets = [12, 0], sizes = [4, 4], strides = [1, 1]} : vector<16x4xf32> to vector<4x4xf32>
    %31 = arith.cmpf ogt, %30, %29 : vector<4x4xf32>
    %c3_i32 = arith.constant 3 : i32
    %32 = vector.broadcast %c3_i32 : i32 to vector<4x4xi32>
    %33 = arith.select %31, %32, %28 : vector<4x4xi1>, vector<4x4xi32>
    %c1_i32_14 = arith.constant 1 : i32
    %34 = vector.broadcast %c1_i32_14 : i32 to vector<4x4xi32>
    %35 = arith.addi %33, %34 : vector<4x4xi32>
    %36 = vector.shape_cast %35 : vector<4x4xi32> to vector<1x4x4xi32>
    %c0_15 = arith.constant 0 : index
    %c0_16 = arith.constant 0 : index
    %c0_17 = arith.constant 0 : index
    %37 = vector.load %arg7[%c0_15, %c0_16, %c0_17] : memref<1x4x4xi32, #tpu.memory_space<vmem>>, vector<1x4x4xi32>
    tpu.vector_store %arg7[%c0_15, %c0_16, %c0_17], %36 {strides = array<i32>} : memref<1x4x4xi32, #tpu.memory_space<vmem>>, vector<1x4x4xi32>,
    return
  }
  func.func @transform_0(%arg0: i32) -> (i32, i32) {
    %c0_i32 = arith.constant 0 : i32
    %c0_i32_0 = arith.constant 0 : i32
    return %arg0, %c0_i32 : i32, i32
  }
  func.func @transform_1(%arg0: i32) -> (i32, i32) {
    %c0_i32 = arith.constant 0 : i32
    %c0_i32_0 = arith.constant 0 : i32
    %c0_i32_1 = arith.constant 0 : i32
    return %c0_i32, %c0_i32_0 : i32, i32
  }
  func.func @transform_2(%arg0: i32) -> (i32, i32) {
    %c0_i32 = arith.constant 0 : i32
    %c0_i32_0 = arith.constant 0 : i32
    %c0_i32_1 = arith.constant 0 : i32
    return %c0_i32, %c0_i32_0 : i32, i32
  }
  func.func @transform_3(%arg0: i32) -> (i32, i32) {
    %c0_i32 = arith.constant 0 : i32
    %c0_i32_0 = arith.constant 0 : i32
    %c0_i32_1 = arith.constant 0 : i32
    return %c0_i32, %c0_i32_0 : i32, i32
  }
  func.func @transform_4(%arg0: i32) -> (i32, i32) {
    %c0_i32 = arith.constant 0 : i32
    %c0_i32_0 = arith.constant 0 : i32
    %c0_i32_1 = arith.constant 0 : i32
    return %c0_i32, %c0_i32_0 : i32, i32
  }
  func.func @transform_5(%arg0: i32) -> (i32, i32, i32) {
    %c0_i32 = arith.constant 0 : i32
    %c0_i32_0 = arith.constant 0 : i32
    %c0_i32_1 = arith.constant 0 : i32
    return %arg0, %c0_i32, %c0_i32_0 : i32, i32, i32
  }
  func.func @transform_6(%arg0: i32) -> (i32, i32, i32) {
    %c0_i32 = arith.constant 0 : i32
    %c0_i32_0 = arith.constant 0 : i32
    %c0_i32_1 = arith.constant 0 : i32
    return %arg0, %c0_i32, %c0_i32_0 : i32, i32, i32
  }
}

</mosaic_0001>

<llo_original>
// kernel: tpu_custom_call.1
$region0: #{tpu_custom_call.1}
  #allocation0 [shape = 'u32[]', space=smem, size = 0x4, offset = 0x4, fixed_abs, tag = 'smem constant byte address 0x4 - core index']
  #allocation1 [shape = 'u32[72,128]{1,0:T(1,128)}', space=vmem, size = 0x9000, scoped, tag = 'internal scratch']
  %s0 = inlined_call_operand.vmem [shape: f32[4,128], index: 0, kind: input, shape index: {}]
  %s1 = inlined_call_operand.vmem [shape: bf16[128,512], index: 1, kind: input, shape index: {}]
  %s2 = inlined_call_operand.vmem [shape: f32[1,512], index: 2, kind: input, shape index: {}]
  %s3 = inlined_call_operand.vmem [shape: bf16[512,16], index: 3, kind: input, shape index: {}]
  %s4 = inlined_call_operand.vmem [shape: f32[1,16], index: 4, kind: input, shape index: {}]
  %s5 = inlined_call_operand.vmem [shape: f32[1,16,4], index: 5, kind: output, shape index: {0}]
  %s6 = inlined_call_operand.hbm [shape: s32[1,4,4], index: 6, kind: output, shape index: {1}]
  %7 = xla_tuple %s5, %s6
  %s8 = sld [smem:[#allocation0]]
  $region38: #{tpu_custom_call.1} parent=0
    _
  %s10 = ssub.s32 1, %s8
  %s11 = scalar_select 0, %s10, %s8
  $region1: #{tpu_custom_call.1} parent=0
    #allocation2 [shape = 'u8[2048]{0}', space=vmem, size = 0x800, scoped, tag = 'output window, operand 1, single buffered']
    #allocation3 [shape = 's32[1]{0}', space=sflag, size = 0x4, scoped, tag = 'scoped memory for tpu_custom_call.1']
    %12 = vsyncpa [#allocation3], 0
    // Predicated region
    $region2: #{tpu_custom_call.1} parent=1 // pred_check
      _
    $region3: #{tpu_custom_call.1} parent=1 // pred_check_branch
      %14 = sbr.rel (0) target = $region5
    $region4: #{tpu_custom_call.1} parent=1 // pred_region
      _
    $region5: #{tpu_custom_call.1} parent=1 // pred_fallthru
      _
    // Predicated region
    $region6: #{tpu_custom_call.1} parent=1 // pred_check
      _
    $region7: #{tpu_custom_call.1} parent=1 // pred_check_branch
      %16 = sbr.rel (0) target = $region9
    $region8: #{tpu_custom_call.1} parent=1 // pred_region
      _
    $region9: #{tpu_custom_call.1} parent=1 // pred_fallthru
      _
    // Predicated region
    $region10: #{tpu_custom_call.1} parent=1 // pred_check
      _
    $region11: #{tpu_custom_call.1} parent=1 // pred_check_branch
      %18 = sbr.rel (0) target = $region13
    $region12: #{tpu_custom_call.1} parent=1 // pred_region
      _
    $region13: #{tpu_custom_call.1} parent=1 // pred_fallthru
      _
    // Predicated region
    $region14: #{tpu_custom_call.1} parent=1 // pred_check
      _
    $region15: #{tpu_custom_call.1} parent=1 // pred_check_branch
      %20 = sbr.rel (0) target = $region17
    $region16: #{tpu_custom_call.1} parent=1 // pred_region
      _
    $region17: #{tpu_custom_call.1} parent=1 // pred_fallthru
      _
    // Predicated region
    $region18: #{tpu_custom_call.1} parent=1 // pred_check
      _
    $region19: #{tpu_custom_call.1} parent=1 // pred_check_branch
      %22 = sbr.rel (0) target = $region21
    $region20: #{tpu_custom_call.1} parent=1 // pred_region
      _
    $region21: #{tpu_custom_call.1} parent=1 // pred_fallthru
      _
    %v23 = vld [vmem:[%s0] sm:$0xf]
    %v24 = vpack.c.bf16 %v23, %v23
    %v25 = vld [vmem:[%s1] sm:$0xff]
    %v26 = vld [vmem:[%s1 + $0x8] sm:$0xff]
    %v27 = vld [vmem:[%s1 + $0x10] sm:$0xff]
    %v28 = vld [vmem:[%s1 + $0x18] sm:$0xff]
    %v29 = vld [vmem:[%s1 + $0x20] sm:$0xff]
    %v30 = vld [vmem:[%s1 + $0x28] sm:$0xff]
    %v31 = vld [vmem:[%s1 + $0x30] sm:$0xff]
    %v32 = vld [vmem:[%s1 + $0x38] sm:$0xff]
    %v33 = vld [vmem:[%s1 + $0x40] sm:$0xff]
    %v34 = vld [vmem:[%s1 + $0x48] sm:$0xff]
    %v35 = vld [vmem:[%s1 + $0x50] sm:$0xff]
    %v36 = vld [vmem:[%s1 + $0x58] sm:$0xff]
    %v37 = vld [vmem:[%s1 + $0x60] sm:$0xff]
    %v38 = vld [vmem:[%s1 + $0x68] sm:$0xff]
    %v39 = vld [vmem:[%s1 + $0x70] sm:$0xff]
    %v40 = vld [vmem:[%s1 + $0x78] sm:$0xff]
    %v41 = vld [vmem:[%s1 + $0x80] sm:$0xff]
    %v42 = vld [vmem:[%s1 + $0x88] sm:$0xff]
    %v43 = vld [vmem:[%s1 + $0x90] sm:$0xff]
    %v44 = vld [vmem:[%s1 + $0x98] sm:$0xff]
    %v45 = vld [vmem:[%s1 + $0xa0] sm:$0xff]
    %v46 = vld [vmem:[%s1 + $0xa8] sm:$0xff]
    %v47 = vld [vmem:[%s1 + $0xb0] sm:$0xff]
    %v48 = vld [vmem:[%s1 + $0xb8] sm:$0xff]
    %v49 = vld [vmem:[%s1 + $0xc0] sm:$0xff]
    %v50 = vld [vmem:[%s1 + $0xc8] sm:$0xff]
    %v51 = vld [vmem:[%s1 + $0xd0] sm:$0xff]
    %v52 = vld [vmem:[%s1 + $0xd8] sm:$0xff]
    %v53 = vld [vmem:[%s1 + $0xe0] sm:$0xff]
    %v54 = vld [vmem:[%s1 + $0xe8] sm:$0xff]
    %v55 = vld [vmem:[%s1 + $0xf0] sm:$0xff]
    %v56 = vld [vmem:[%s1 + $0xf8] sm:$0xff]
    %v57 = vld [vmem:[%s2] sm:$0xf]
    %v59 = vperm.slane %v57, 0
    %v60 = vperm.slane %v57, 1
    %v61 = vperm.slane %v57, 2
    %v62 = vperm.slane %v57, 3
    %v99 = vunpack.c.l.b16 %v25
    %v100 = vunpack.c.h.b16 %v25
    %v101 = vunpack.c.l.b16 %v26
    %v102 = vunpack.c.h.b16 %v26
    %v103 = vunpack.c.l.b16 %v27
    %v104 = vunpack.c.h.b16 %v27
    %v105 = vunpack.c.l.b16 %v28
    %v106 = vunpack.c.h.b16 %v28
    %v107 = vunpack.c.l.b16 %v29
    %v108 = vunpack.c.h.b16 %v29
    %v109 = vunpack.c.l.b16 %v30
    %v110 = vunpack.c.h.b16 %v30
    %v111 = vunpack.c.l.b16 %v31
    %v112 = vunpack.c.h.b16 %v31
    %v113 = vunpack.c.l.b16 %v32
    %v114 = vunpack.c.h.b16 %v32
    %v115 = vunpack.c.l.b16 %v33
    %v116 = vunpack.c.h.b16 %v33
    %v117 = vunpack.c.l.b16 %v34
    %v118 = vunpack.c.h.b16 %v34
    %v119 = vunpack.c.l.b16 %v35
    %v120 = vunpack.c.h.b16 %v35
    %v121 = vunpack.c.l.b16 %v36
    %v122 = vunpack.c.h.b16 %v36
    %v123 = vunpack.c.l.b16 %v37
    %v124 = vunpack.c.h.b16 %v37
    %v125 = vunpack.c.l.b16 %v38
    %v126 = vunpack.c.h.b16 %v38
    %v127 = vunpack.c.l.b16 %v39
    %v128 = vunpack.c.h.b16 %v39
    %v129 = vunpack.c.l.b16 %v40
    %v130 = vunpack.c.h.b16 %v40
    %v131 = vunpack.c.l.b16 %v41
    %v132 = vunpack.c.h.b16 %v41
    %v133 = vunpack.c.l.b16 %v42
    %v134 = vunpack.c.h.b16 %v42
    %v135 = vunpack.c.l.b16 %v43
    %v136 = vunpack.c.h.b16 %v43
    %v137 = vunpack.c.l.b16 %v44
    %v138 = vunpack.c.h.b16 %v44
    %v139 = vunpack.c.l.b16 %v45
    %v140 = vunpack.c.h.b16 %v45
    %v141 = vunpack.c.l.b16 %v46
    %v142 = vunpack.c.h.b16 %v46
    %v143 = vunpack.c.l.b16 %v47
    %v144 = vunpack.c.h.b16 %v47
    %v145 = vunpack.c.l.b16 %v48
    %v146 = vunpack.c.h.b16 %v48
    %v147 = vunpack.c.l.b16 %v49
    %v148 = vunpack.c.h.b16 %v49
    %v149 = vunpack.c.l.b16 %v50
    %v150 = vunpack.c.h.b16 %v50
    %v151 = vunpack.c.l.b16 %v51
    %v152 = vunpack.c.h.b16 %v51
    %v153 = vunpack.c.l.b16 %v52
    %v154 = vunpack.c.h.b16 %v52
    %v155 = vunpack.c.l.b16 %v53
    %v156 = vunpack.c.h.b16 %v53
    %v157 = vunpack.c.l.b16 %v54
    %v158 = vunpack.c.h.b16 %v54
    %v159 = vunpack.c.l.b16 %v55
    %v160 = vunpack.c.h.b16 %v55
    %v161 = vunpack.c.l.b16 %v56
    %v162 = vunpack.c.h.b16 %v56
    %v163 = vpack.c.b16 %v103, %v99
    %v164 = vpack.c.b16 %v104, %v100
    %v165 = vpack.c.b16 %v105, %v101
    %v166 = vpack.c.b16 %v106, %v102
    %v167 = vpack.c.b16 %v111, %v107
    %v168 = vpack.c.b16 %v112, %v108
    %v169 = vpack.c.b16 %v113, %v109
    %v170 = vpack.c.b16 %v114, %v110
    %v171 = vpack.c.b16 %v119, %v115
    %v172 = vpack.c.b16 %v120, %v116
    %v173 = vpack.c.b16 %v121, %v117
    %v174 = vpack.c.b16 %v122, %v118
    %v175 = vpack.c.b16 %v127, %v123
    %v176 = vpack.c.b16 %v128, %v124
    %v177 = vpack.c.b16 %v129, %v125
    %v178 = vpack.c.b16 %v130, %v126
    %v179 = vpack.c.b16 %v135, %v131
    %v180 = vpack.c.b16 %v136, %v132
    %v181 = vpack.c.b16 %v137, %v133
    %v182 = vpack.c.b16 %v138, %v134
    %v183 = vpack.c.b16 %v143, %v139
    %v184 = vpack.c.b16 %v144, %v140
    %v185 = vpack.c.b16 %v145, %v141
    %v186 = vpack.c.b16 %v146, %v142
    %v187 = vpack.c.b16 %v151, %v147
    %v188 = vpack.c.b16 %v152, %v148
    %v189 = vpack.c.b16 %v153, %v149
    %v190 = vpack.c.b16 %v154, %v150
    %v191 = vpack.c.b16 %v159, %v155
    %v192 = vpack.c.b16 %v160, %v156
    %v193 = vpack.c.b16 %v161, %v157
    %v194 = vpack.c.b16 %v162, %v158
    %227 = vmatpush.bf16.msra.mxu0 %v191
    %228 = vmatpush.bf16.msra.mxu0 %v187
    %229 = vmatpush.bf16.msra.mxu0 %v183
    %230 = vmatpush.bf16.msra.mxu0 %v179
    %231 = vmatpush.bf16.msra.mxu0 %v175
    %232 = vmatpush.bf16.msra.mxu0 %v171
    %233 = vmatpush.bf16.msra.mxu0 %v167
    %234 = vmatpush.bf16.msra.mxu0 %v163
    %235 = vmatmul.bf16.gmra.mxu0 %v24
    %v236 = vpop.f32.mrf.mxu0
    %v237 = vadd.f32 %v59, %v236
    %v238 = vpop.f32.mrf.mxu0
    %239 = vdwg.mxu0
    %240 = vmatpush.bf16.msra.mxu0 %v192
    %241 = vmatpush.bf16.msra.mxu0 %v188
    %242 = vmatpush.bf16.msra.mxu0 %v184
    %243 = vmatpush.bf16.msra.mxu0 %v180
    %244 = vmatpush.bf16.msra.mxu0 %v176
    %245 = vmatpush.bf16.msra.mxu0 %v172
    %246 = vmatpush.bf16.msra.mxu0 %v168
    %247 = vmatpush.bf16.msra.mxu0 %v164
    %248 = vmatmul.bf16.gmra.mxu0 %v24
    %v249 = vpop.f32.mrf.mxu0
    %v250 = vadd.f32 %v60, %v249
    %v251 = vpop.f32.mrf.mxu0
    %252 = vdwg.mxu0
    %253 = vmatpush.bf16.msra.mxu0 %v193
    %254 = vmatpush.bf16.msra.mxu0 %v189
    %255 = vmatpush.bf16.msra.mxu0 %v185
    %256 = vmatpush.bf16.msra.mxu0 %v181
    %257 = vmatpush.bf16.msra.mxu0 %v177
    %258 = vmatpush.bf16.msra.mxu0 %v173
    %259 = vmatpush.bf16.msra.mxu0 %v169
    %260 = vmatpush.bf16.msra.mxu0 %v165
    %261 = vmatmul.bf16.gmra.mxu0 %v24
    %v262 = vpop.f32.mrf.mxu0
    %v263 = vadd.f32 %v61, %v262
    %v264 = vpop.f32.mrf.mxu0
    %265 = vdwg.mxu0
    %266 = vmatpush.bf16.msra.mxu0 %v194
    %267 = vmatpush.bf16.msra.mxu0 %v190
    %268 = vmatpush.bf16.msra.mxu0 %v186
    %269 = vmatpush.bf16.msra.mxu0 %v182
    %270 = vmatpush.bf16.msra.mxu0 %v178
    %271 = vmatpush.bf16.msra.mxu0 %v174
    %272 = vmatpush.bf16.msra.mxu0 %v170
    %273 = vmatpush.bf16.msra.mxu0 %v166
    %274 = vmatmul.bf16.gmra.mxu0 %v24
    %v275 = vpop.f32.mrf.mxu0
    %v276 = vadd.f32 %v62, %v275
    %v277 = vpop.f32.mrf.mxu0
    %278 = vdwg.mxu0
    %v279 = vmax.f32 %v237, 0.0
    %v280 = vmax.f32 %v250, 0.0
    %v281 = vmax.f32 %v263, 0.0
    %v282 = vmax.f32 %v276, 0.0
    %v283 = vpack.c.bf16 %v279, %v279
    %v284 = vpack.c.bf16 %v280, %v280
    %v285 = vpack.c.bf16 %v281, %v281
    %v286 = vpack.c.bf16 %v282, %v282
    %v287 = vld [vmem:[%s3] sm:$0xf]
    %v288 = vld [vmem:[%s3 + $0x4] sm:$0xf]
    %v289 = vld [vmem:[%s3 + $0x8] sm:$0xf]
    %v290 = vld [vmem:[%s3 + $0xc] sm:$0xf]
    %v291 = vld [vmem:[%s3 + $0x10] sm:$0xf]
    %v292 = vld [vmem:[%s3 + $0x14] sm:$0xf]
    %v293 = vld [vmem:[%s3 + $0x18] sm:$0xf]
    %v294 = vld [vmem:[%s3 + $0x1c] sm:$0xf]
    %v295 = vld [vmem:[%s3 + $0x20] sm:$0xf]
    %v296 = vld [vmem:[%s3 + $0x24] sm:$0xf]
    %v297 = vld [vmem:[%s3 + $0x28] sm:$0xf]
    %v298 = vld [vmem:[%s3 + $0x2c] sm:$0xf]
    %v299 = vld [vmem:[%s3 + $0x30] sm:$0xf]
    %v300 = vld [vmem:[%s3 + $0x34] sm:$0xf]
    %v301 = vld [vmem:[%s3 + $0x38] sm:$0xf]
    %v302 = vld [vmem:[%s3 + $0x3c] sm:$0xf]
    %v303 = vld [vmem:[%s3 + $0x40] sm:$0xf]
    %v304 = vld [vmem:[%s3 + $0x44] sm:$0xf]
    %v305 = vld [vmem:[%s3 + $0x48] sm:$0xf]
    %v306 = vld [vmem:[%s3 + $0x4c] sm:$0xf]
    %v307 = vld [vmem:[%s3 + $0x50] sm:$0xf]
    %v308 = vld [vmem:[%s3 + $0x54] sm:$0xf]
    %v309 = vld [vmem:[%s3 + $0x58] sm:$0xf]
    %v310 = vld [vmem:[%s3 + $0x5c] sm:$0xf]
    %v311 = vld [vmem:[%s3 + $0x60] sm:$0xf]
    %v312 = vld [vmem:[%s3 + $0x64] sm:$0xf]
    %v313 = vld [vmem:[%s3 + $0x68] sm:$0xf]
    %v314 = vld [vmem:[%s3 + $0x6c] sm:$0xf]
    %v315 = vld [vmem:[%s3 + $0x70] sm:$0xf]
    %v316 = vld [vmem:[%s3 + $0x74] sm:$0xf]
    %v317 = vld [vmem:[%s3 + $0x78] sm:$0xf]
    %v318 = vld [vmem:[%s3 + $0x7c] sm:$0xf]
    %v319 = vld [vmem:[%s3 + $0x80] sm:$0xf]
    %v320 = vld [vmem:[%s3 + $0x84] sm:$0xf]
    %v321 = vld [vmem:[%s3 + $0x88] sm:$0xf]
    %v322 = vld [vmem:[%s3 + $0x8c] sm:$0xf]
    %v323 = vld [vmem:[%s3 + $0x90] sm:$0xf]
    %v324 = vld [vmem:[%s3 + $0x94] sm:$0xf]
    %v325 = vld [vmem:[%s3 + $0x98] sm:$0xf]
    %v326 = vld [vmem:[%s3 + $0x9c] sm:$0xf]
    %v327 = vld [vmem:[%s3 + $0xa0] sm:$0xf]
    %v328 = vld [vmem:[%s3 + $0xa4] sm:$0xf]
    %v329 = vld [vmem:[%s3 + $0xa8] sm:$0xf]
    %v330 = vld [vmem:[%s3 + $0xac] sm:$0xf]
    %v331 = vld [vmem:[%s3 + $0xb0] sm:$0xf]
    %v332 = vld [vmem:[%s3 + $0xb4] sm:$0xf]
    %v333 = vld [vmem:[%s3 + $0xb8] sm:$0xf]
    %v334 = vld [vmem:[%s3 + $0xbc] sm:$0xf]
    %v335 = vld [vmem:[%s3 + $0xc0] sm:$0xf]
    %v336 = vld [vmem:[%s3 + $0xc4] sm:$0xf]
    %v337 = vld [vmem:[%s3 + $0xc8] sm:$0xf]
    %v338 = vld [vmem:[%s3 + $0xcc] sm:$0xf]
    %v339 = vld [vmem:[%s3 + $0xd0] sm:$0xf]
    %v340 = vld [vmem:[%s3 + $0xd4] sm:$0xf]
    %v341 = vld [vmem:[%s3 + $0xd8] sm:$0xf]
    %v342 = vld [vmem:[%s3 + $0xdc] sm:$0xf]
    %v343 = vld [vmem:[%s3 + $0xe0] sm:$0xf]
    %v344 = vld [vmem:[%s3 + $0xe4] sm:$0xf]
    %v345 = vld [vmem:[%s3 + $0xe8] sm:$0xf]
    %v346 = vld [vmem:[%s3 + $0xec] sm:$0xf]
    %v347 = vld [vmem:[%s3 + $0xf0] sm:$0xf]
    %v348 = vld [vmem:[%s3 + $0xf4] sm:$0xf]
    %v349 = vld [vmem:[%s3 + $0xf8] sm:$0xf]
    %v350 = vld [vmem:[%s3 + $0xfc] sm:$0xf]
    %v351 = vld [vmem:[%s4] sm:$0x1]
    %v353 = vperm.slane %v351, 0
    %v419 = vunpack.c.l.b16 %v287
    %v420 = vunpack.c.l.b16 %v288
    %v421 = vunpack.c.l.b16 %v289
    %v422 = vunpack.c.l.b16 %v290
    %v423 = vunpack.c.l.b16 %v291
    %v424 = vunpack.c.l.b16 %v292
    %v425 = vunpack.c.l.b16 %v293
    %v426 = vunpack.c.l.b16 %v294
    %v427 = vunpack.c.l.b16 %v295
    %v428 = vunpack.c.l.b16 %v296
    %v429 = vunpack.c.l.b16 %v297
    %v430 = vunpack.c.l.b16 %v298
    %v431 = vunpack.c.l.b16 %v299
    %v432 = vunpack.c.l.b16 %v300
    %v433 = vunpack.c.l.b16 %v301
    %v434 = vunpack.c.l.b16 %v302
    %v435 = vunpack.c.l.b16 %v303
    %v436 = vunpack.c.l.b16 %v304
    %v437 = vunpack.c.l.b16 %v305
    %v438 = vunpack.c.l.b16 %v306
    %v439 = vunpack.c.l.b16 %v307
    %v440 = vunpack.c.l.b16 %v308
    %v441 = vunpack.c.l.b16 %v309
    %v442 = vunpack.c.l.b16 %v310
    %v443 = vunpack.c.l.b16 %v311
    %v444 = vunpack.c.l.b16 %v312
    %v445 = vunpack.c.l.b16 %v313
    %v446 = vunpack.c.l.b16 %v314
    %v447 = vunpack.c.l.b16 %v315
    %v448 = vunpack.c.l.b16 %v316
    %v449 = vunpack.c.l.b16 %v317
    %v450 = vunpack.c.l.b16 %v318
    %v451 = vunpack.c.l.b16 %v319
    %v452 = vunpack.c.l.b16 %v320
    %v453 = vunpack.c.l.b16 %v321
    %v454 = vunpack.c.l.b16 %v322
    %v455 = vunpack.c.l.b16 %v323
    %v456 = vunpack.c.l.b16 %v324
    %v457 = vunpack.c.l.b16 %v325
    %v458 = vunpack.c.l.b16 %v326
    %v459 = vunpack.c.l.b16 %v327
    %v460 = vunpack.c.l.b16 %v328
    %v461 = vunpack.c.l.b16 %v329
    %v462 = vunpack.c.l.b16 %v330
    %v463 = vunpack.c.l.b16 %v331
    %v464 = vunpack.c.l.b16 %v332
    %v465 = vunpack.c.l.b16 %v333
    %v466 = vunpack.c.l.b16 %v334
    %v467 = vunpack.c.l.b16 %v335
    %v468 = vunpack.c.l.b16 %v336
    %v469 = vunpack.c.l.b16 %v337
    %v470 = vunpack.c.l.b16 %v338
    %v471 = vunpack.c.l.b16 %v339
    %v472 = vunpack.c.l.b16 %v340
    %v473 = vunpack.c.l.b16 %v341
    %v474 = vunpack.c.l.b16 %v342
    %v475 = vunpack.c.l.b16 %v343
    %v476 = vunpack.c.l.b16 %v344
    %v477 = vunpack.c.l.b16 %v345
    %v478 = vunpack.c.l.b16 %v346
    %v479 = vunpack.c.l.b16 %v347
    %v480 = vunpack.c.l.b16 %v348
    %v481 = vunpack.c.l.b16 %v349
    %v482 = vunpack.c.l.b16 %v350
    %v483 = vpack.c.b16 %v420, %v419
    %v484 = vpack.c.b16 %v422, %v421
    %v485 = vpack.c.b16 %v424, %v423
    %v486 = vpack.c.b16 %v426, %v425
    %v487 = vpack.c.b16 %v428, %v427
    %v488 = vpack.c.b16 %v430, %v429
    %v489 = vpack.c.b16 %v432, %v431
    %v490 = vpack.c.b16 %v434, %v433
    %v491 = vpack.c.b16 %v436, %v435
    %v492 = vpack.c.b16 %v438, %v437
    %v493 = vpack.c.b16 %v440, %v439
    %v494 = vpack.c.b16 %v442, %v441
    %v495 = vpack.c.b16 %v444, %v443
    %v496 = vpack.c.b16 %v446, %v445
    %v497 = vpack.c.b16 %v448, %v447
    %v498 = vpack.c.b16 %v450, %v449
    %v499 = vpack.c.b16 %v452, %v451
    %v500 = vpack.c.b16 %v454, %v453
    %v501 = vpack.c.b16 %v456, %v455
    %v502 = vpack.c.b16 %v458, %v457
    %v503 = vpack.c.b16 %v460, %v459
    %v504 = vpack.c.b16 %v462, %v461
    %v505 = vpack.c.b16 %v464, %v463
    %v506 = vpack.c.b16 %v466, %v465
    %v507 = vpack.c.b16 %v468, %v467
    %v508 = vpack.c.b16 %v470, %v469
    %v509 = vpack.c.b16 %v472, %v471
    %v510 = vpack.c.b16 %v474, %v473
    %v511 = vpack.c.b16 %v476, %v475
    %v512 = vpack.c.b16 %v478, %v477
    %v513 = vpack.c.b16 %v480, %v479
    %v514 = vpack.c.b16 %v482, %v481
    %547 = vmatpush.bf16.msra.mxu0 %v490
    %548 = vmatpush.bf16.msra.mxu0 %v489
    %549 = vmatpush.bf16.msra.mxu0 %v488
    %550 = vmatpush.bf16.msra.mxu0 %v487
    %551 = vmatpush.bf16.msra.mxu0 %v486
    %552 = vmatpush.bf16.msra.mxu0 %v485
    %553 = vmatpush.bf16.msra.mxu0 %v484
    %554 = vmatpush.bf16.msra.mxu0 %v483
    %555 = vmatmul.bf16.gmra.mxu0 %v283
    %v556 = vpop.f32.mrf.mxu0
    %v557 = vadd.f32 %v353, %v556
    %v558 = vpop.f32.mrf.mxu0
    %559 = vdwg.mxu0
    %560 = vmatpush.bf16.msra.mxu0 %v498
    %561 = vmatpush.bf16.msra.mxu0 %v497
    %562 = vmatpush.bf16.msra.mxu0 %v496
    %563 = vmatpush.bf16.msra.mxu0 %v495
    %564 = vmatpush.bf16.msra.mxu0 %v494
    %565 = vmatpush.bf16.msra.mxu0 %v493
    %566 = vmatpush.bf16.msra.mxu0 %v492
    %567 = vmatpush.bf16.msra.mxu0 %v491
    %568 = vmatmul.bf16.gmra.mxu0 %v284
    %v569 = vpop.f32.mrf.mxu0
    %v570 = vadd.f32 %v557, %v569
    %v571 = vpop.f32.mrf.mxu0
    %572 = vdwg.mxu0
    %573 = vmatpush.bf16.msra.mxu0 %v506
    %574 = vmatpush.bf16.msra.mxu0 %v505
    %575 = vmatpush.bf16.msra.mxu0 %v504
    %576 = vmatpush.bf16.msra.mxu0 %v503
    %577 = vmatpush.bf16.msra.mxu0 %v502
    %578 = vmatpush.bf16.msra.mxu0 %v501
    %579 = vmatpush.bf16.msra.mxu0 %v500
    %580 = vmatpush.bf16.msra.mxu0 %v499
    %581 = vmatmul.bf16.gmra.mxu0 %v285
    %v582 = vpop.f32.mrf.mxu0
    %v583 = vadd.f32 %v570, %v582
    %v584 = vpop.f32.mrf.mxu0
    %585 = vdwg.mxu0
    %586 = vmatpush.bf16.msra.mxu0 %v514
    %587 = vmatpush.bf16.msra.mxu0 %v513
    %588 = vmatpush.bf16.msra.mxu0 %v512
    %589 = vmatpush.bf16.msra.mxu0 %v511
    %590 = vmatpush.bf16.msra.mxu0 %v510
    %591 = vmatpush.bf16.msra.mxu0 %v509
    %592 = vmatpush.bf16.msra.mxu0 %v508
    %593 = vmatpush.bf16.msra.mxu0 %v507
    %594 = vmatmul.bf16.gmra.mxu0 %v286
    %v595 = vpop.f32.mrf.mxu0
    %v596 = vadd.f32 %v583, %v595
    %v597 = vpop.f32.mrf.mxu0
    %598 = vdwg.mxu0
    %599 = vxpose.xlu0.b32.start [1/16] %v596, 128
    %600 = vxpose.xlu0.b32.cont [2/16] 0.0, 128
    %601 = vxpose.xlu0.b32.cont [3/16] 0.0, 128
    %602 = vxpose.xlu0.b32.cont [4/16] 0.0, 128
    %603 = vxpose.xlu0.b32.cont [5/16] 0.0, 128
    %604 = vxpose.xlu0.b32.cont [6/16] 0.0, 128
    %605 = vxpose.xlu0.b32.cont [7/16] 0.0, 128
    %606 = vxpose.xlu0.b32.cont [8/16] 0.0, 128
    %607 = vxpose.xlu0.b32.cont [9/16] 0.0, 128
    %608 = vxpose.xlu0.b32.cont [10/16] 0.0, 128
    %609 = vxpose.xlu0.b32.cont [11/16] 0.0, 128
    %610 = vxpose.xlu0.b32.cont [12/16] 0.0, 128
    %611 = vxpose.xlu0.b32.cont [13/16] 0.0, 128
    %612 = vxpose.xlu0.b32.cont [14/16] 0.0, 128
    %613 = vxpose.xlu0.b32.cont [15/16] 0.0, 128
    %614 = vxpose.xlu0.b32.end [16/16] 0.0, 128
    %v615 = vpop.trf.xlu0
    %v616 = vpop.trf.xlu0
    %v617 = vpop.trf.xlu0
    %v618 = vpop.trf.xlu0
    %v619 = vpop.trf.xlu0
    %v620 = vpop.trf.xlu0
    %v621 = vpop.trf.xlu0
    %v622 = vpop.trf.xlu0
    %v623 = vpop.trf.xlu0
    %v624 = vpop.trf.xlu0
    %v625 = vpop.trf.xlu0
    %v626 = vpop.trf.xlu0
    %v627 = vpop.trf.xlu0
    %v628 = vpop.trf.xlu0
    %v629 = vpop.trf.xlu0
    %v630 = vpop.trf.xlu0
    %vm631 = vcmask 31744
    %632 = vst.msk [vmem:[%s5] sm:$0xff] %vm631, %v615
    %633 = vst.msk [vmem:[%s5 + $0x8] sm:$0xff] %vm631, %v616
    %v635 = vrot.slane %v615, 4
    %vm637 = vcmp.gt.f32.partialorder %v615, %v635
    %v638 = vsel %vm637, 1, 0
    %v639 = vsel %vm637, %v615, %v635
    %v641 = vrot.slane %v639, 4
    %vm643 = vcmp.gt.f32.partialorder %v616, %v641
    %v644 = vrot.slane %v638, 4
    %v645 = vsel %vm643, 2, %v644
    %v646 = vsel %vm643, %v616, %v641
    %v648 = vrot.slane %v646, 4
    %vm650 = vcmp.gt.f32.partialorder %v616, %v648
    %v651 = vrot.slane %v645, 4
    %v652 = vsel %vm650, 3, %v651
    %v653 = vadd.s32 %v652, 1
    %vm654 = vcmask 31748
    %655 = vst.msk [vmem:[#allocation2 - $0x4] sm:$0xf0] %vm654, %v653
    // Predicated region
    $region22: #{tpu_custom_call.1} parent=1 // pred_check
      _
    $region23: #{tpu_custom_call.1} parent=1 // pred_check_branch
      %657 = sbr.rel (0) target = $region25
    $region24: #{tpu_custom_call.1} parent=1 // pred_region
      _
    $region25: #{tpu_custom_call.1} parent=1 // pred_fallthru
      _
    // Predicated region
    $region26: #{tpu_custom_call.1} parent=1 // pred_check
      _
    $region27: #{tpu_custom_call.1} parent=1 // pred_check_branch
      %659 = sbr.rel (0) target = $region29
    $region28: #{tpu_custom_call.1} parent=1 // pred_region
      %661 = vsyncadd [#allocation3], 0
      %s663 = sshll.u32 [#allocation2], 4
      %s664 = int_to_ptr.vmem [resolvable:$true] %s663
      %s665 = sshll.u32 %s6, 4
      %s666 = int_to_ptr.hbm [resolvable:$true] %s665
      %668 = dma.vmem_to_hbm [thread:$0]  %s664, 64, %s666, [#allocation3]
    $region29: #{tpu_custom_call.1} parent=1 // pred_fallthru
      _
    // Predicated region
    $region30: #{tpu_custom_call.1} parent=1 // pred_check
      _
    $region31: #{tpu_custom_call.1} parent=1 // pred_check_branch
      %670 = sbr.rel (0) target = $region33
    $region32: #{tpu_custom_call.1} parent=1 // pred_region
      _
    $region33: #{tpu_custom_call.1} parent=1 // pred_fallthru
      _
    // Predicated region
    $region34: #{tpu_custom_call.1} parent=1 // pred_check
      _
    $region35: #{tpu_custom_call.1} parent=1 // pred_check_branch
      %672 = sbr.rel (0) target = $region37
    $region36: #{tpu_custom_call.1} parent=1 // pred_region
      %674 = dma.done [#allocation3], 64
    $region37: #{tpu_custom_call.1} parent=1 // pred_fallthru
      _
    %675 = vsyncpa [#allocation3], 1

</llo_original>
